<compile_context>
chip_gen: v7x
topology: tpu7x:2x2x1
jax: 0.10.0
libtpu: 0.0.40
codegen_flags: <defaults>
</compile_context>

<pallas_src>
import functools

import jax
import jax.numpy as jnp
from jax.experimental import pallas as pl
from jax.experimental.pallas import tpu as pltpu


# ------------------------------ Pallas kernel --------------------------------

def _attention_kernel(enc_ref, dec_ref, w_enc_ref, b_enc_ref,
                      w_dec_ref, b_dec_ref, w_v_ref, b_v_ref,
                      ctx_ref, alpha_ref):
    # Per grid step we handle one batch element; all tensors below live in VMEM.
    enc = enc_ref[0]                                              # (P, De) f32

    # encoder_linear_transform: (P, De) @ (De, A)  -- MXU, bf16 in / f32 acc.
    att1 = jnp.dot(enc.astype(jnp.bfloat16),
                   w_enc_ref[...].astype(jnp.bfloat16),
                   preferred_element_type=jnp.float32) + b_enc_ref[...]      # (P, A)

    # decoder_linear_transform: (1, Dd) @ (Dd, A)
    att2 = jnp.dot(dec_ref[0].astype(jnp.bfloat16),
                   w_dec_ref[...].astype(jnp.bfloat16),
                   preferred_element_type=jnp.float32) + b_dec_ref[...]      # (1, A)

    # relu(att1 + att2)  (broadcast over pixels) -- f32 epilogue on the VPU.
    att = jnp.maximum(att1 + att2, 0.0)                           # (P, A)

    # attention_value: Linear(A, 1) as an elementwise mul + lane reduction.
    scores = jnp.sum(att * w_v_ref[...], axis=-1, keepdims=True) + b_v_ref[...]  # (P, 1)

    # softmax over the P pixels (sublane axis), numerically stable.
    m = jnp.max(scores, axis=0, keepdims=True)
    e = jnp.exp(scores - m)
    alpha = e / jnp.sum(e, axis=0, keepdims=True)                 # (P, 1)
    alpha_ref[0] = alpha.astype(alpha_ref.dtype)

    # attention-weighted sum of encoder features over pixels (sublane reduction).
    ctx_ref[0] = jnp.sum(enc * alpha, axis=0, keepdims=True).astype(ctx_ref.dtype)  # (1, De)


# ------------------------------ wrapper ---------------------------------------

def attention_forward(encoder_out, decoder_hidden, params):
    """encoder_out: (B, P, De) f32, decoder_hidden: (B, Dd) f32.

    Returns (encoding_with_attention: (B, De), alpha: (B, P)) — same semantics as the
    PyTorch Attention.forward.
    """
    B, P, De = encoder_out.shape
    Dd = decoder_hidden.shape[1]
    A = params["w_enc"].shape[1]

    # Shape decoder state / outputs so every block's last-two dims equal the full
    # array dims (keeps all BlockSpecs trivially layout-legal).
    dec3 = decoder_hidden.reshape(B, 1, Dd)

    ctx, alpha = pl.pallas_call(
        _attention_kernel,
        out_shape=(jax.ShapeDtypeStruct((B, 1, De), jnp.float32),
                   jax.ShapeDtypeStruct((B, P, 1), jnp.float32)),
        grid=(B,),
        in_specs=[
            pl.BlockSpec((1, P, De), lambda b: (b, 0, 0)),    # encoder_out (per batch)
            pl.BlockSpec((1, 1, Dd), lambda b: (b, 0, 0)),    # decoder_hidden (per batch)
            pl.BlockSpec((De, A), lambda b: (0, 0)),          # W_enc (resident)
            pl.BlockSpec((1, A), lambda b: (0, 0)),           # b_enc
            pl.BlockSpec((Dd, A), lambda b: (0, 0)),          # W_dec (resident)
            pl.BlockSpec((1, A), lambda b: (0, 0)),           # b_dec
            pl.BlockSpec((1, A), lambda b: (0, 0)),           # w_v (row of Linear(A,1))
            pl.BlockSpec((1, 1), lambda b: (0, 0)),           # b_v
        ],
        out_specs=(
            pl.BlockSpec((1, 1, De), lambda b: (b, 0, 0)),    # context vector
            pl.BlockSpec((1, P, 1), lambda b: (b, 0, 0)),     # alpha
        ),
        compiler_params=pltpu.CompilerParams(dimension_semantics=("parallel",)),
    )(encoder_out, dec3,
      params["w_enc"], params["b_enc"],
      params["w_dec"], params["b_dec"],
      params["w_v"], params["b_v"])

    return ctx[:, 0, :], alpha[:, :, 0]


# ------------------------------ parameters ------------------------------------

def init_params(key, encoder_dim, decoder_dim, attention_dim):
    ks = jax.random.split(key, 6)

    def linear(kw, kb, fan_in, w_shape, b_shape):
        bound = 1.0 / (fan_in ** 0.5)
        w = jax.random.uniform(kw, w_shape, jnp.float32, -bound, bound)
        b = jax.random.uniform(kb, b_shape, jnp.float32, -bound, bound)
        return w, b

    # Weights stored as (in, out) so the kernel computes x @ W (== torch x @ W.T).
    w_enc, b_enc = linear(ks[0], ks[1], encoder_dim, (encoder_dim, attention_dim), (1, attention_dim))
    w_dec, b_dec = linear(ks[2], ks[3], decoder_dim, (decoder_dim, attention_dim), (1, attention_dim))
    w_v, b_v = linear(ks[4], ks[5], attention_dim, (1, attention_dim), (1, 1))
    return {"w_enc": w_enc, "b_enc": b_enc,
            "w_dec": w_dec, "b_dec": b_dec,
            "w_v": w_v, "b_v": b_v}


# ------------------------------ pure-JAX reference -----------------------------

def ref_attention(encoder_out, decoder_hidden, params):
    att1 = encoder_out @ params["w_enc"] + params["b_enc"][0]            # (B, P, A)
    att2 = decoder_hidden @ params["w_dec"] + params["b_dec"][0]         # (B, A)
    att = jnp.maximum(att1 + att2[:, None, :], 0.0)
    scores = jnp.sum(att * params["w_v"][0], axis=-1) + params["b_v"][0, 0]   # (B, P)
    alpha = jax.nn.softmax(scores, axis=1)
    ctx = jnp.sum(encoder_out * alpha[:, :, None], axis=1)               # (B, De)
    return ctx, alpha


# ----------------------------------- main --------------------------------------

if __name__ == "__main__":
    key = jax.random.PRNGKey(0)
    k_enc, k_dec, k_par = jax.random.split(key, 3)

    B = 2                      # batch
    P = 16                     # num_pixels (encoded_image_size 4 -> 4*4)
    ENC_DIM = 128              # encoder_dim (lane-dense context output)
    DEC_DIM = 64               # decoder_dim
    ATT_DIM = 128              # attention_dim

    encoder_out = jax.random.normal(k_enc, (B, P, ENC_DIM), jnp.float32)
    decoder_hidden = jax.random.normal(k_dec, (B, DEC_DIM), jnp.float32)
    params = init_params(k_par, ENC_DIM, DEC_DIM, ATT_DIM)

    fwd = jax.jit(attention_forward)
    ctx, alpha = jax.block_until_ready(fwd(encoder_out, decoder_hidden, params))

    ref_ctx, ref_alpha = ref_attention(encoder_out, decoder_hidden, params)

    assert ctx.shape == (B, ENC_DIM), ctx.shape
    assert alpha.shape == (B, P), alpha.shape
    assert jnp.allclose(jnp.sum(alpha, axis=1), 1.0, atol=1e-3)

    err_alpha = float(jnp.max(jnp.abs(alpha - ref_alpha)))
    err_ctx = float(jnp.max(jnp.abs(ctx - ref_ctx)))
    # bf16 MXU inputs with f32 accumulation -> loose-but-safe tolerance.
    assert err_alpha < 2e-2, err_alpha
    assert err_ctx < 2e-2, err_ctx

    print("KERNEL_OK")
</pallas_src>

<mosaic_0001>
module attributes {stable_mosaic.version = 11 : i64} {
  func.func @_attention_kernel(%arg0: i32, %arg1: memref<1x16x128xf32, #tpu.memory_space<vmem>>, %arg2: memref<1x1x64xf32, #tpu.memory_space<vmem>>, %arg3: memref<128x128xf32, #tpu.memory_space<vmem>>, %arg4: memref<1x128xf32, #tpu.memory_space<vmem>>, %arg5: memref<64x128xf32, #tpu.memory_space<vmem>>, %arg6: memref<1x128xf32, #tpu.memory_space<vmem>>, %arg7: memref<1x128xf32, #tpu.memory_space<vmem>>, %arg8: memref<1x1xf32, #tpu.memory_space<vmem>>, %arg9: memref<1x1x128xf32, #tpu.memory_space<vmem>>, %arg10: memref<1x16x1xf32, #tpu.memory_space<vmem>>) attributes {dimension_semantics = [#tpu.dimension_semantics<parallel>], iteration_bounds = array<i64: 2>, scalar_prefetch = 0 : i64, scratch_operands = 0 : i64, tpu.core_type = #tpu.core_type<tc>, window_params = [{transform_indices = @transform_0, window_bounds = array<i64: 1, 16, 128>}, {transform_indices = @transform_1, window_bounds = array<i64: 1, 1, 64>}, {pipeline_mode = #tpu.pipeline_mode<synchronous>, transform_indices = @transform_2, window_bounds = array<i64: 128, 128>}, {pipeline_mode = #tpu.pipeline_mode<synchronous>, transform_indices = @transform_3, window_bounds = array<i64: 1, 128>}, {pipeline_mode = #tpu.pipeline_mode<synchronous>, transform_indices = @transform_4, window_bounds = array<i64: 64, 128>}, {pipeline_mode = #tpu.pipeline_mode<synchronous>, transform_indices = @transform_5, window_bounds = array<i64: 1, 128>}, {pipeline_mode = #tpu.pipeline_mode<synchronous>, transform_indices = @transform_6, window_bounds = array<i64: 1, 128>}, {pipeline_mode = #tpu.pipeline_mode<synchronous>, transform_indices = @transform_7, window_bounds = array<i64: 1, 1>}, {transform_indices = @transform_8, window_bounds = array<i64: 1, 1, 128>}, {transform_indices = @transform_9, window_bounds = array<i64: 1, 16, 1>}]} {
    %c0 = arith.constant 0 : index
    %c0_0 = arith.constant 0 : index
    %c0_1 = arith.constant 0 : index
    %0 = vector.load %arg1[%c0, %c0_0, %c0_1] : memref<1x16x128xf32, #tpu.memory_space<vmem>>, vector<1x16x128xf32>
    %1 = vector.shape_cast %0 : vector<1x16x128xf32> to vector<16x128xf32>
    %2 = arith.truncf %1 : vector<16x128xf32> to vector<16x128xbf16>
    %c0_2 = arith.constant 0 : index
    %c0_3 = arith.constant 0 : index
    %3 = vector.load %arg3[%c0_2, %c0_3] : memref<128x128xf32, #tpu.memory_space<vmem>>, vector<128x128xf32>
    %4 = arith.truncf %3 : vector<128x128xf32> to vector<128x128xbf16>
    %cst = arith.constant dense<0.000000e+00> : vector<16x128xf32>
    %5 = tpu.matmul %2, %4, %cst {dimension_numbers = #tpu.dot_dimension_numbers<[1], [0], [0], [1], [0, 0, 1, 1], [], []>} : vector<16x128xbf16>, vector<128x128xbf16>, vector<16x128xf32> -> vector<16x128xf32>
    %c0_4 = arith.constant 0 : index
    %c0_5 = arith.constant 0 : index
    %6 = vector.load %arg4[%c0_4, %c0_5] : memref<1x128xf32, #tpu.memory_space<vmem>>, vector<1x128xf32>
    %7 = vector.broadcast %6 : vector<1x128xf32> to vector<16x128xf32>
    %8 = arith.addf %5, %7 : vector<16x128xf32>
    %c0_6 = arith.constant 0 : index
    %c0_7 = arith.constant 0 : index
    %c0_8 = arith.constant 0 : index
    %9 = vector.load %arg2[%c0_6, %c0_7, %c0_8] : memref<1x1x64xf32, #tpu.memory_space<vmem>>, vector<1x1x64xf32>
    %10 = vector.shape_cast %9 : vector<1x1x64xf32> to vector<1x64xf32>
    %11 = arith.truncf %10 : vector<1x64xf32> to vector<1x64xbf16>
    %c0_9 = arith.constant 0 : index
    %c0_10 = arith.constant 0 : index
    %12 = vector.load %arg5[%c0_9, %c0_10] : memref<64x128xf32, #tpu.memory_space<vmem>>, vector<64x128xf32>
    %13 = arith.truncf %12 : vector<64x128xf32> to vector<64x128xbf16>
    %cst_11 = arith.constant dense<0.000000e+00> : vector<1x128xf32>
    %14 = tpu.matmul %11, %13, %cst_11 {dimension_numbers = #tpu.dot_dimension_numbers<[1], [0], [0], [1], [0, 0, 1, 1], [], []>} : vector<1x64xbf16>, vector<64x128xbf16>, vector<1x128xf32> -> vector<1x128xf32>
    %c0_12 = arith.constant 0 : index
    %c0_13 = arith.constant 0 : index
    %15 = vector.load %arg6[%c0_12, %c0_13] : memref<1x128xf32, #tpu.memory_space<vmem>>, vector<1x128xf32>
    %16 = arith.addf %14, %15 : vector<1x128xf32>
    %17 = vector.broadcast %16 : vector<1x128xf32> to vector<16x128xf32>
    %18 = arith.addf %8, %17 : vector<16x128xf32>
    %cst_14 = arith.constant 0.000000e+00 : f32
    %19 = vector.broadcast %cst_14 : f32 to vector<16x128xf32>
    %20 = arith.maximumf %18, %19 : vector<16x128xf32>
    %c0_15 = arith.constant 0 : index
    %c0_16 = arith.constant 0 : index
    %21 = vector.load %arg7[%c0_15, %c0_16] : memref<1x128xf32, #tpu.memory_space<vmem>>, vector<1x128xf32>
    %22 = vector.broadcast %21 : vector<1x128xf32> to vector<16x128xf32>
    %23 = arith.mulf %20, %22 : vector<16x128xf32>
    %cst_17 = arith.constant dense<0.000000e+00> : vector<16xf32>
    %24 = vector.multi_reduction <add>, %23, %cst_17 [1] : vector<16x128xf32> to vector<16xf32>
    %25 = vector.shape_cast %24 : vector<16xf32> to vector<16x1xf32>
    %c0_18 = arith.constant 0 : index
    %c0_19 = arith.constant 0 : index
    %26 = vector.load %arg8[%c0_18, %c0_19] : memref<1x1xf32, #tpu.memory_space<vmem>>, vector<1x1xf32>
    %27 = vector.broadcast %26 : vector<1x1xf32> to vector<16x1xf32>
    %28 = arith.addf %25, %27 : vector<16x1xf32>
    %cst_20 = arith.constant dense<0xFF800000> : vector<1xf32>
    %29 = vector.multi_reduction <maximumf>, %28, %cst_20 [0] : vector<16x1xf32> to vector<1xf32>
    %30 = vector.shape_cast %29 : vector<1xf32> to vector<1x1xf32>
    %31 = vector.broadcast %30 : vector<1x1xf32> to vector<16x1xf32>
    %32 = arith.subf %28, %31 : vector<16x1xf32>
    %33 = math.exp %32 : vector<16x1xf32>
    %cst_21 = arith.constant dense<0.000000e+00> : vector<1xf32>
    %34 = vector.multi_reduction <add>, %33, %cst_21 [0] : vector<16x1xf32> to vector<1xf32>
    %35 = vector.shape_cast %34 : vector<1xf32> to vector<1x1xf32>
    %36 = vector.broadcast %35 : vector<1x1xf32> to vector<16x1xf32>
    %37 = arith.divf %33, %36 : vector<16x1xf32>
    %c0_22 = arith.constant 0 : index
    %c0_23 = arith.constant 0 : index
    %c0_24 = arith.constant 0 : index
    %38 = vector.load %arg10[%c0_22, %c0_23, %c0_24] : memref<1x16x1xf32, #tpu.memory_space<vmem>>, vector<1x16x1xf32>
    %39 = vector.shape_cast %38 : vector<1x16x1xf32> to vector<16x1xf32>
    %40 = vector.shape_cast %37 : vector<16x1xf32> to vector<1x16x1xf32>
    tpu.vector_store %arg10[%c0_22, %c0_23, %c0_24], %40 {strides = array<i32>} : memref<1x16x1xf32, #tpu.memory_space<vmem>>, vector<1x16x1xf32>,
    %41 = vector.broadcast %37 : vector<16x1xf32> to vector<16x128xf32>
    %42 = arith.mulf %1, %41 : vector<16x128xf32>
    %cst_25 = arith.constant dense<0.000000e+00> : vector<128xf32>
    %43 = vector.multi_reduction <add>, %42, %cst_25 [0] : vector<16x128xf32> to vector<128xf32>
    %44 = vector.shape_cast %43 : vector<128xf32> to vector<1x128xf32>
    %c0_26 = arith.constant 0 : index
    %c0_27 = arith.constant 0 : index
    %c0_28 = arith.constant 0 : index
    %45 = vector.load %arg9[%c0_26, %c0_27, %c0_28] : memref<1x1x128xf32, #tpu.memory_space<vmem>>, vector<1x1x128xf32>
    %46 = vector.shape_cast %45 : vector<1x1x128xf32> to vector<1x128xf32>
    %47 = vector.shape_cast %44 : vector<1x128xf32> to vector<1x1x128xf32>
    tpu.vector_store %arg9[%c0_26, %c0_27, %c0_28], %47 {strides = array<i32>} : memref<1x1x128xf32, #tpu.memory_space<vmem>>, vector<1x1x128xf32>,
    return
  }
  func.func @transform_0(%arg0: i32) -> (i32, i32, i32) {
    %c0_i32 = arith.constant 0 : i32
    %c0_i32_0 = arith.constant 0 : i32
    %c0_i32_1 = arith.constant 0 : i32
    return %arg0, %c0_i32, %c0_i32_0 : i32, i32, i32
  }
  func.func @transform_1(%arg0: i32) -> (i32, i32, i32) {
    %c0_i32 = arith.constant 0 : i32
    %c0_i32_0 = arith.constant 0 : i32
    %c0_i32_1 = arith.constant 0 : i32
    return %arg0, %c0_i32, %c0_i32_0 : i32, i32, i32
  }
  func.func @transform_2(%arg0: i32) -> (i32, i32) {
    %c0_i32 = arith.constant 0 : i32
    %c0_i32_0 = arith.constant 0 : i32
    %c0_i32_1 = arith.constant 0 : i32
    return %c0_i32, %c0_i32_0 : i32, i32
  }
  func.func @transform_3(%arg0: i32) -> (i32, i32) {
    %c0_i32 = arith.constant 0 : i32
    %c0_i32_0 = arith.constant 0 : i32
    %c0_i32_1 = arith.constant 0 : i32
    return %c0_i32, %c0_i32_0 : i32, i32
  }
  func.func @transform_4(%arg0: i32) -> (i32, i32) {
    %c0_i32 = arith.constant 0 : i32
    %c0_i32_0 = arith.constant 0 : i32
    %c0_i32_1 = arith.constant 0 : i32
    return %c0_i32, %c0_i32_0 : i32, i32
  }
  func.func @transform_5(%arg0: i32) -> (i32, i32) {
    %c0_i32 = arith.constant 0 : i32
    %c0_i32_0 = arith.constant 0 : i32
    %c0_i32_1 = arith.constant 0 : i32
    return %c0_i32, %c0_i32_0 : i32, i32
  }
  func.func @transform_6(%arg0: i32) -> (i32, i32) {
    %c0_i32 = arith.constant 0 : i32
    %c0_i32_0 = arith.constant 0 : i32
    %c0_i32_1 = arith.constant 0 : i32
    return %c0_i32, %c0_i32_0 : i32, i32
  }
  func.func @transform_7(%arg0: i32) -> (i32, i32) {
    %c0_i32 = arith.constant 0 : i32
    %c0_i32_0 = arith.constant 0 : i32
    %c0_i32_1 = arith.constant 0 : i32
    return %c0_i32, %c0_i32_0 : i32, i32
  }
  func.func @transform_8(%arg0: i32) -> (i32, i32, i32) {
    %c0_i32 = arith.constant 0 : i32
    %c0_i32_0 = arith.constant 0 : i32
    %c0_i32_1 = arith.constant 0 : i32
    return %arg0, %c0_i32, %c0_i32_0 : i32, i32, i32
  }
  func.func @transform_9(%arg0: i32) -> (i32, i32, i32) {
    %c0_i32 = arith.constant 0 : i32
    %c0_i32_0 = arith.constant 0 : i32
    %c0_i32_1 = arith.constant 0 : i32
    return %arg0, %c0_i32, %c0_i32_0 : i32, i32, i32
  }
}

</mosaic_0001>

<llo_original>
// kernel: attention_forward.1
$region0: #{attention_forward.1}
  #allocation0 [shape = 'u32[]', space=smem, size = 0x4, offset = 0x4, fixed_abs, tag = 'smem constant byte address 0x4 - core index']
  #allocation1 [shape = 'u32[144,128]{1,0:T(1,128)}', space=vmem, size = 0x12000, scoped, tag = 'internal scratch']
  #allocation2 [shape = 'f32[1,1]{1,0:T(1,128)S(1)}', space=vmem, size = 0x200, scoped, tag = 'scoped memory for attention_forward.1']
  %s0 = inlined_call_operand.hbm [shape: f32[2,16,128], index: 0, kind: input, shape index: {}]
  %s1 = inlined_call_operand.vmem [shape: f32[2,1,64], index: 1, kind: input, shape index: {}]
  %s2 = inlined_call_operand.hbm [shape: f32[128,128], index: 2, kind: input, shape index: {}]
  %s3 = inlined_call_operand.vmem [shape: f32[1,128], index: 3, kind: input, shape index: {}]
  %s4 = inlined_call_operand.hbm [shape: f32[64,128], index: 4, kind: input, shape index: {}]
  %s5 = inlined_call_operand.vmem [shape: f32[1,128], index: 5, kind: input, shape index: {}]
  %s6 = inlined_call_operand.vmem [shape: f32[1,128], index: 6, kind: input, shape index: {}]
  %s7 = inlined_call_operand.<no memory space> [shape: f32[1,1], index: 7, kind: input, shape index: {}]
  %s8 = inlined_call_operand.hbm [shape: f32[2,1,128], index: 8, kind: output, shape index: {0}]
  %s9 = inlined_call_operand.vmem [shape: f32[2,16,1], index: 9, kind: output, shape index: {1}]
  %10 = xla_tuple %s8, %s9
  %s11 = sld [smem:[#allocation0]]
  $region85: #{attention_forward.1} parent=0
    _
  %s13 = ssub.s32 1, %s11
  %s14 = scalar_select 0, %s13, %s11
  %v15 = vstv %s7
  %16 = vst [vmem:[#allocation2] sm:$0x1] %v15
  $region1: #{attention_forward.1} parent=0
    #allocation3 [shape = 'u8[16384]{0}', space=vmem, size = 0x4000, scoped, tag = 'input window, operand 0']
    #allocation4 [shape = 's32[2]{0}', space=sflag, size = 0x8, scoped, tag = 'scoped memory for attention_forward.1']
    #allocation5 [shape = 's32[2]{0}', space=sflag, size = 0x8, scoped, tag = 'scoped memory for attention_forward.1']
    #allocation6 [shape = 'u8[65536]{0}', space=vmem, size = 0x10000, scoped, tag = 'input window, operand 2, single buffered']
    #allocation7 [shape = 's32[1]{0}', space=sflag, size = 0x4, scoped, tag = 'scoped memory for attention_forward.1']
    #allocation8 [shape = 'u8[32768]{0}', space=vmem, size = 0x8000, scoped, tag = 'input window, operand 4, single buffered']
    #allocation9 [shape = 'u8[1024]{0}', space=vmem, size = 0x400, scoped, tag = 'output window, operand 0']
    %17 = vsyncpa [#allocation4], 0
    %s18 = scalar_lea.sflag [#allocation4], 1
    %19 = vsyncpa %s18, 0
    %20 = vsyncpa [#allocation7], 0
    %21 = vsyncpa [#allocation5], 0
    %s22 = scalar_lea.sflag [#allocation5], 1
    %23 = vsyncpa %s22, 0
    loop: start=0, step=1, limit=4
    $region2: #{attention_forward.1} parent=1 // loop_pre_header
      _
    $region3: #{attention_forward.1} parent=1 // loop_header
      %s25 = sphi 0, %s29
      %p26 = scmp.ge.s32.totalorder %s25, 4
      %s35 = sphi 0, %s37
      %s38 = sphi 0, %s35
      %s39 = sphi 0, %s38
      %s55 = sphi 0, %s39
      %s61 = sphi 0, %s63
      %s64 = sphi 0, %s61
      %s65 = sphi 0, %s64
      %s81 = sphi 0, %s65
      %s85 = sphi 0, %s85
      %s87 = sphi 0, %s85
      %s88 = sphi 0, %s87
      %s102 = sphi 0, %s88
      %s106 = sphi 0, %s106
      %s108 = sphi 0, %s106
      %s109 = sphi 0, %s108
      %s123 = sphi 0, %s109
      %s127 = sphi 0, %s127
      %s129 = sphi 0, %s127
      %s130 = sphi 0, %s129
      %s144 = sphi 0, %s130
      %s148 = sphi 0, %s148
      %s150 = sphi 0, %s148
      %s151 = sphi 0, %s150
      %s165 = sphi 0, %s151
      %s169 = sphi 0, %s169
      %s171 = sphi 0, %s169
      %s172 = sphi 0, %s171
      %s186 = sphi 0, %s172
      %s190 = sphi 0, %s190
      %s192 = sphi 0, %s190
      %s193 = sphi 0, %s192
      %s207 = sphi 0, %s193
      %s213 = sphi 0, %s215
      %s216 = sphi 0, %s213
      %s217 = sphi 0, %s216
      %s233 = sphi 0, %s217
      %s239 = sphi 0, %s241
      %s242 = sphi 0, %s239
      %s243 = sphi 0, %s242
      %s259 = sphi 0, %s243
    $region4: #{attention_forward.1} parent=1 // loop_header_branch
      %28 = sbr.rel (%p26) target = $region8
    $region5: #{attention_forward.1} parent=1 // loop_body
      %s30 = ssub.s32 %s25, 1
      %s31 = ssub.s32 %s25, 2
      %s32 = sadd.s32 %s25, 1
      %s33 = ssub.s32 %s25, %s32
      %p34 = scmp.eq.s32.totalorder %s33, 0
      %s36 = sadd.s32 %s35, 1
      %s37 = scalar_select %p34, %s35, %s36
      %p40 = pneg %p34
      %p41 = scmp.eq.s32.totalorder %s25, 1
      %p42 = por %p40, %p41
      %p43 = scmp.ne.s32.totalorder %s35, %s38
      %p44 = scmp.eq.s32.totalorder %s25, 0
      %p45 = por %p43, %p44
      %p46 = scmp.ne.s32.totalorder %s35, %s38
      %p47 = scmp.eq.s32.totalorder %s30, 1
      %p48 = por %p46, %p47
      %p49 = scmp.ne.s32.totalorder %s38, %s39
      %p50 = scmp.eq.s32.totalorder %s30, 0
      %p51 = por %p49, %p50
      %p52 = scmp.ne.s32.totalorder %s38, %s39
      %p53 = scmp.eq.s32.totalorder %s31, 1
      %p54 = por %p52, %p53
      %p56 = scmp.ne.s32.totalorder %s39, %s55
      %p57 = scmp.eq.s32.totalorder %s31, 0
      %p58 = por %p56, %p57
      %s59 = ssub.s32 %s25, %s32
      %p60 = scmp.eq.s32.totalorder %s59, 0
      %s62 = sadd.s32 %s61, 1
      %s63 = scalar_select %p60, %s61, %s62
      %p66 = pneg %p60
      %p67 = scmp.eq.s32.totalorder %s25, 1
      %p68 = por %p66, %p67
      %p69 = scmp.ne.s32.totalorder %s61, %s64
      %p70 = scmp.eq.s32.totalorder %s25, 0
      %p71 = por %p69, %p70
      %p72 = scmp.ne.s32.totalorder %s61, %s64
      %p73 = scmp.eq.s32.totalorder %s30, 1
      %p74 = por %p72, %p73
      %p75 = scmp.ne.s32.totalorder %s64, %s65
      %p76 = scmp.eq.s32.totalorder %s30, 0
      %p77 = por %p75, %p76
      %p78 = scmp.ne.s32.totalorder %s64, %s65
      %p79 = scmp.eq.s32.totalorder %s31, 1
      %p80 = por %p78, %p79
      %p82 = scmp.ne.s32.totalorder %s65, %s81
      %p83 = scmp.eq.s32.totalorder %s31, 0
      %p84 = por %p82, %p83
      %s86 = sadd.s32 %s85, 1
      %p89 = scmp.eq.s32.totalorder %s25, 1
      %p90 = scmp.ne.s32.totalorder %s85, %s87
      %p91 = scmp.eq.s32.totalorder %s25, 0
      %p92 = por %p90, %p91
      %p93 = scmp.ne.s32.totalorder %s85, %s87
      %p94 = scmp.eq.s32.totalorder %s30, 1
      %p95 = por %p93, %p94
      %p96 = scmp.ne.s32.totalorder %s87, %s88
      %p97 = scmp.eq.s32.totalorder %s30, 0
      %p98 = por %p96, %p97
      %p99 = scmp.ne.s32.totalorder %s87, %s88
      %p100 = scmp.eq.s32.totalorder %s31, 1
      %p101 = por %p99, %p100
      %p103 = scmp.ne.s32.totalorder %s88, %s102
      %p104 = scmp.eq.s32.totalorder %s31, 0
      %p105 = por %p103, %p104
      %s107 = sadd.s32 %s106, 1
      %p110 = scmp.eq.s32.totalorder %s25, 1
      %p111 = scmp.ne.s32.totalorder %s106, %s108
      %p112 = scmp.eq.s32.totalorder %s25, 0
      %p113 = por %p111, %p112
      %p114 = scmp.ne.s32.totalorder %s106, %s108
      %p115 = scmp.eq.s32.totalorder %s30, 1
      %p116 = por %p114, %p115
      %p117 = scmp.ne.s32.totalorder %s108, %s109
      %p118 = scmp.eq.s32.totalorder %s30, 0
      %p119 = por %p117, %p118
      %p120 = scmp.ne.s32.totalorder %s108, %s109
      %p121 = scmp.eq.s32.totalorder %s31, 1
      %p122 = por %p120, %p121
      %p124 = scmp.ne.s32.totalorder %s109, %s123
      %p125 = scmp.eq.s32.totalorder %s31, 0
      %p126 = por %p124, %p125
      %s128 = sadd.s32 %s127, 1
      %p131 = scmp.eq.s32.totalorder %s25, 1
      %p132 = scmp.ne.s32.totalorder %s127, %s129
      %p133 = scmp.eq.s32.totalorder %s25, 0
      %p134 = por %p132, %p133
      %p135 = scmp.ne.s32.totalorder %s127, %s129
      %p136 = scmp.eq.s32.totalorder %s30, 1
      %p137 = por %p135, %p136
      %p138 = scmp.ne.s32.totalorder %s129, %s130
      %p139 = scmp.eq.s32.totalorder %s30, 0
      %p140 = por %p138, %p139
      %p141 = scmp.ne.s32.totalorder %s129, %s130
      %p142 = scmp.eq.s32.totalorder %s31, 1
      %p143 = por %p141, %p142
      %p145 = scmp.ne.s32.totalorder %s130, %s144
      %p146 = scmp.eq.s32.totalorder %s31, 0
      %p147 = por %p145, %p146
      %s149 = sadd.s32 %s148, 1
      %p152 = scmp.eq.s32.totalorder %s25, 1
      %p153 = scmp.ne.s32.totalorder %s148, %s150
      %p154 = scmp.eq.s32.totalorder %s25, 0
      %p155 = por %p153, %p154
      %p156 = scmp.ne.s32.totalorder %s148, %s150
      %p157 = scmp.eq.s32.totalorder %s30, 1
      %p158 = por %p156, %p157
      %p159 = scmp.ne.s32.totalorder %s150, %s151
      %p160 = scmp.eq.s32.totalorder %s30, 0
      %p161 = por %p159, %p160
      %p162 = scmp.ne.s32.totalorder %s150, %s151
      %p163 = scmp.eq.s32.totalorder %s31, 1
      %p164 = por %p162, %p163
      %p166 = scmp.ne.s32.totalorder %s151, %s165
      %p167 = scmp.eq.s32.totalorder %s31, 0
      %p168 = por %p166, %p167
      %s170 = sadd.s32 %s169, 1
      %p173 = scmp.eq.s32.totalorder %s25, 1
      %p174 = scmp.ne.s32.totalorder %s169, %s171
      %p175 = scmp.eq.s32.totalorder %s25, 0
      %p176 = por %p174, %p175
      %p177 = scmp.ne.s32.totalorder %s169, %s171
      %p178 = scmp.eq.s32.totalorder %s30, 1
      %p179 = por %p177, %p178
      %p180 = scmp.ne.s32.totalorder %s171, %s172
      %p181 = scmp.eq.s32.totalorder %s30, 0
      %p182 = por %p180, %p181
      %p183 = scmp.ne.s32.totalorder %s171, %s172
      %p184 = scmp.eq.s32.totalorder %s31, 1
      %p185 = por %p183, %p184
      %p187 = scmp.ne.s32.totalorder %s172, %s186
      %p188 = scmp.eq.s32.totalorder %s31, 0
      %p189 = por %p187, %p188
      %s191 = sadd.s32 %s190, 1
      %p194 = scmp.eq.s32.totalorder %s25, 1
      %p195 = scmp.ne.s32.totalorder %s190, %s192
      %p196 = scmp.eq.s32.totalorder %s25, 0
      %p197 = por %p195, %p196
      %p198 = scmp.ne.s32.totalorder %s190, %s192
      %p199 = scmp.eq.s32.totalorder %s30, 1
      %p200 = por %p198, %p199
      %p201 = scmp.ne.s32.totalorder %s192, %s193
      %p202 = scmp.eq.s32.totalorder %s30, 0
      %p203 = por %p201, %p202
      %p204 = scmp.ne.s32.totalorder %s192, %s193
      %p205 = scmp.eq.s32.totalorder %s31, 1
      %p206 = por %p204, %p205
      %p208 = scmp.ne.s32.totalorder %s193, %s207
      %p209 = scmp.eq.s32.totalorder %s31, 0
      %p210 = por %p208, %p209
      %s211 = ssub.s32 %s25, %s32
      %p212 = scmp.eq.s32.totalorder %s211, 0
      %s214 = sadd.s32 %s213, 1
      %s215 = scalar_select %p212, %s213, %s214
      %p218 = pneg %p212
      %p219 = scmp.eq.s32.totalorder %s25, 1
      %p220 = por %p218, %p219
      %p221 = scmp.ne.s32.totalorder %s213, %s216
      %p222 = scmp.eq.s32.totalorder %s25, 0
      %p223 = por %p221, %p222
      %p224 = scmp.ne.s32.totalorder %s213, %s216
      %p225 = scmp.eq.s32.totalorder %s30, 1
      %p226 = por %p224, %p225
      %p227 = scmp.ne.s32.totalorder %s216, %s217
      %p228 = scmp.eq.s32.totalorder %s30, 0
      %p229 = por %p227, %p228
      %p230 = scmp.ne.s32.totalorder %s216, %s217
      %p231 = scmp.eq.s32.totalorder %s31, 1
      %p232 = por %p230, %p231
      %p234 = scmp.ne.s32.totalorder %s217, %s233
      %p235 = scmp.eq.s32.totalorder %s31, 0
      %p236 = por %p234, %p235
      %s237 = ssub.s32 %s25, %s32
      %p238 = scmp.eq.s32.totalorder %s237, 0
      %s240 = sadd.s32 %s239, 1
      %s241 = scalar_select %p238, %s239, %s240
      %p244 = pneg %p238
      %p245 = scmp.eq.s32.totalorder %s25, 1
      %p246 = por %p244, %p245
      %p247 = scmp.ne.s32.totalorder %s239, %s242
      %p248 = scmp.eq.s32.totalorder %s25, 0
      %p249 = por %p247, %p248
      %p250 = scmp.ne.s32.totalorder %s239, %s242
      %p251 = scmp.eq.s32.totalorder %s30, 1
      %p252 = por %p250, %p251
      %p253 = scmp.ne.s32.totalorder %s242, %s243
      %p254 = scmp.eq.s32.totalorder %s30, 0
      %p255 = por %p253, %p254
      %p256 = scmp.ne.s32.totalorder %s242, %s243
      %p257 = scmp.eq.s32.totalorder %s31, 1
      %p258 = por %p256, %p257
      %p260 = scmp.ne.s32.totalorder %s243, %s259
      %p261 = scmp.eq.s32.totalorder %s31, 0
      %p262 = por %p260, %p261
      %p263 = scmp.le.s32.totalorder 1, %s25
      %p264 = scmp.lt.s32.totalorder %s25, 3
      %p265 = pnand %p263, %p264
      %p266 = pneg %p265
      // Predicated region
      $region9: #{attention_forward.1} parent=5 // pred_check
        _
      $region10: #{attention_forward.1} parent=5 // pred_check_branch
        %268 = sbr.rel (%p265) target = $region12
      $region11: #{attention_forward.1} parent=5 // pred_region
        %s269 = ssub.s32 %s25, 1
        // Predicated region
        $region13: #{attention_forward.1} parent=11 // pred_check
          %p270 = pneg %p98
        $region14: #{attention_forward.1} parent=11 // pred_check_branch
          %272 = sbr.rel (%p270) target = $region16
        $region15: #{attention_forward.1} parent=11 // pred_region
          %s274 = ssub.s32 2048, 2048
          %275 = vsyncadd [#allocation7], %s274
          %s276 = sshll.u32 [#allocation6], 4
          %s277 = int_to_ptr.vmem [resolvable:$true] %s276
          %282 = dma.hbm_to_vmem [thread:$0]  %s2, 2048, %s277, [#allocation7], 128, 128, 8
        $region16: #{attention_forward.1} parent=11 // pred_fallthru
          _
        // Predicated region
        $region17: #{attention_forward.1} parent=11 // pred_check
          %p283 = pneg %p119
        $region18: #{attention_forward.1} parent=11 // pred_check_branch
          %285 = sbr.rel (%p283) target = $region20
        $region19: #{attention_forward.1} parent=11 // pred_region
          _
        $region20: #{attention_forward.1} parent=11 // pred_fallthru
          _
        // Predicated region
        $region21: #{attention_forward.1} parent=11 // pred_check
          %p286 = pneg %p140
        $region22: #{attention_forward.1} parent=11 // pred_check_branch
          %288 = sbr.rel (%p286) target = $region24
        $region23: #{attention_forward.1} parent=11 // pred_region
          %s290 = ssub.s32 1024, 1024
          %291 = vsyncadd [#allocation7], %s290
          %s292 = sshll.u32 [#allocation8], 4
          %s293 = int_to_ptr.vmem [resolvable:$true] %s292
          %298 = dma.hbm_to_vmem [thread:$0]  %s4, 1024, %s293, [#allocation7], 128, 128, 8
        $region24: #{attention_forward.1} parent=11 // pred_fallthru
          _
        // Predicated region
        $region25: #{attention_forward.1} parent=11 // pred_check
          %p299 = pneg %p161
        $region26: #{attention_forward.1} parent=11 // pred_check_branch
          %301 = sbr.rel (%p299) target = $region28
        $region27: #{attention_forward.1} parent=11 // pred_region
          _
        $region28: #{attention_forward.1} parent=11 // pred_fallthru
          _
        // Predicated region
        $region29: #{attention_forward.1} parent=11 // pred_check
          %p302 = pneg %p182
        $region30: #{attention_forward.1} parent=11 // pred_check_branch
          %304 = sbr.rel (%p302) target = $region32
        $region31: #{attention_forward.1} parent=11 // pred_region
          _
        $region32: #{attention_forward.1} parent=11 // pred_fallthru
          _
        // Predicated region
        $region33: #{attention_forward.1} parent=11 // pred_check
          %p305 = pneg %p203
        $region34: #{attention_forward.1} parent=11 // pred_check_branch
          %307 = sbr.rel (%p305) target = $region36
        $region35: #{attention_forward.1} parent=11 // pred_region
          _
        $region36: #{attention_forward.1} parent=11 // pred_fallthru
          _
      $region12: #{attention_forward.1} parent=5 // pred_fallthru
        _
      %p308 = scmp.lt.s32.totalorder %s25, 2
      // Predicated region
      $region37: #{attention_forward.1} parent=5 // pred_check
        %p309 = pneg %p308
      $region38: #{attention_forward.1} parent=5 // pred_check_branch
        %311 = sbr.rel (%p309) target = $region40
      $region39: #{attention_forward.1} parent=5 // pred_region
        // Predicated region
        $region41: #{attention_forward.1} parent=39 // pred_check
          %p312 = pneg %p45
        $region42: #{attention_forward.1} parent=39 // pred_check_branch
          %314 = sbr.rel (%p312) target = $region44
        $region43: #{attention_forward.1} parent=39 // pred_region
          %s315 = sand.u32 %s35, 1
          %s316 = scalar_lea.sflag [#allocation4], %s315
          %s317 = sand.u32 %s35, 1
          %s318 = smul.addr %s317, 16
          %s319 = scalar_lea.vmem [#allocation3], %s318
          %s321 = ssub.s32 256, 256
          %322 = vsyncadd %s316, %s321
          %s323 = smul.addr %s25, 2
          %s324 = smul.addr %s323, 128
          %s325 = scalar_lea.hbm %s0, %s324
          %s326 = sshll.u32 %s319, 4
          %s327 = int_to_ptr.vmem [resolvable:$true] %s326
          %332 = dma.hbm_to_vmem [thread:$0]  %s325, 256, %s327, %s316, 128, 128, 8
        $region44: #{attention_forward.1} parent=39 // pred_fallthru
          _
        // Predicated region
        $region45: #{attention_forward.1} parent=39 // pred_check
          %p333 = pneg %p71
        $region46: #{attention_forward.1} parent=39 // pred_check_branch
          %335 = sbr.rel (%p333) target = $region48
        $region47: #{attention_forward.1} parent=39 // pred_region
          %p336 = scmp.lt.s32.totalorder %s25, 1
          %s337 = scalar_select %p336, %s25, 1
          %s338 = scalar_lea.vmem %s1, %s337
        $region48: #{attention_forward.1} parent=39 // pred_fallthru
          _
      $region40: #{attention_forward.1} parent=5 // pred_fallthru
        _
      %p339 = scmp.le.s32.totalorder 1, %s25
      %p340 = scmp.lt.s32.totalorder %s25, 3
      %p341 = pnand %p339, %p340
      %p342 = pneg %p341
      // Predicated region
      $region49: #{attention_forward.1} parent=5 // pred_check
        _
      $region50: #{attention_forward.1} parent=5 // pred_check_branch
        %344 = sbr.rel (%p341) target = $region52
      $region51: #{attention_forward.1} parent=5 // pred_region
        %s345 = ssub.s32 %s25, 1
        %s346 = sand.u32 %s38, 1
        %s347 = scalar_lea.sflag [#allocation4], %s346
        %s348 = sand.u32 %s38, 1
        %s349 = smul.addr %s348, 16
        %s350 = scalar_lea.vmem [#allocation3], %s349
        // Predicated region
        $region53: #{attention_forward.1} parent=51 // pred_check
          %p351 = pneg %p51
        $region54: #{attention_forward.1} parent=51 // pred_check_branch
          %353 = sbr.rel (%p351) target = $region56
        $region55: #{attention_forward.1} parent=51 // pred_region
          %354 = dma.done %s347, 256
        $region56: #{attention_forward.1} parent=51 // pred_fallthru
          _
        // Predicated region
        $region57: #{attention_forward.1} parent=51 // pred_check
          %p355 = pneg %p98
        $region58: #{attention_forward.1} parent=51 // pred_check_branch
          %357 = sbr.rel (%p355) target = $region60
        $region59: #{attention_forward.1} parent=51 // pred_region
          %358 = dma.done [#allocation7], 2048
        $region60: #{attention_forward.1} parent=51 // pred_fallthru
          _
        // Predicated region
        $region61: #{attention_forward.1} parent=51 // pred_check
          %p359 = pneg %p140
        $region62: #{attention_forward.1} parent=51 // pred_check_branch
          %361 = sbr.rel (%p359) target = $region64
        $region63: #{attention_forward.1} parent=51 // pred_region
          %362 = dma.done [#allocation7], 1024
        $region64: #{attention_forward.1} parent=51 // pred_fallthru
          _
        %s363 = sand.u32 %s38, 1
        %s364 = scalar_lea.sflag [#allocation4], %s363
        %s365 = sand.u32 %s38, 1
        %s366 = smul.addr %s365, 16
        %s367 = scalar_lea.vmem [#allocation3], %s366
        %p368 = pneg %p51
        %p369 = pneg %p48
        %p370 = scmp.lt.s32.totalorder %s30, 1
        %s371 = scalar_select %p370, %s30, 1
        %s372 = scalar_lea.vmem %s1, %s371
        %p373 = pneg %p77
        %p374 = pneg %p74
        %p375 = pneg %p98
        %p376 = pneg %p95
        %p377 = pneg %p119
        %p378 = pneg %p116
        %p379 = pneg %p140
        %p380 = pneg %p137
        %p381 = pneg %p161
        %p382 = pneg %p158
        %p383 = pneg %p182
        %p384 = pneg %p179
        %p385 = pneg %p203
        %p386 = pneg %p200
        %p387 = pneg %p229
        %p388 = pneg %p226
        %s389 = sand.u32 %s216, 1
        %s390 = scalar_lea.sflag [#allocation5], %s389
        %s391 = sand.u32 %s216, 1
        %s392 = scalar_lea.vmem [#allocation9], %s391
        %p393 = pneg %p255
        %p394 = pneg %p252
        %p395 = scmp.lt.s32.totalorder %s30, 1
        %s396 = scalar_select %p395, %s30, 1
        %s397 = smul.addr %s396, 2
        %s398 = smul.addr %s397, 8
        %s399 = scalar_lea.vmem %s9, %s398
        %p400 = scmp.lt.s32.totalorder %s30, 1
        %s401 = scalar_select %p400, %s30, 1
        %s402 = scalar_lea.vmem %s1, %s401
        %p403 = scmp.lt.s32.totalorder %s30, 1
        %s404 = scalar_select %p403, %s30, 1
        %s405 = smul.addr %s404, 2
        %s406 = smul.addr %s405, 8
        %s407 = scalar_lea.vmem %s9, %s406
        %v409 = vld [vmem:[%s350] sm:$0xff]
        %v410 = vld [vmem:[%s350 + $0x8] sm:$0xff]
        %v411 = vpack.c.bf16 %v410, %v409
        %v412 = vld [vmem:[#allocation6] sm:$0xff]
        %v413 = vld [vmem:[#allocation6 + $0x8] sm:$0xff]
        %v414 = vld [vmem:[#allocation6 + $0x10] sm:$0xff]
        %v415 = vld [vmem:[#allocation6 + $0x18] sm:$0xff]
        %v416 = vld [vmem:[#allocation6 + $0x20] sm:$0xff]
        %v417 = vld [vmem:[#allocation6 + $0x28] sm:$0xff]
        %v418 = vld [vmem:[#allocation6 + $0x30] sm:$0xff]
        %v419 = vld [vmem:[#allocation6 + $0x38] sm:$0xff]
        %v420 = vld [vmem:[#allocation6 + $0x40] sm:$0xff]
        %v421 = vld [vmem:[#allocation6 + $0x48] sm:$0xff]
        %v422 = vld [vmem:[#allocation6 + $0x50] sm:$0xff]
        %v423 = vld [vmem:[#allocation6 + $0x58] sm:$0xff]
        %v424 = vld [vmem:[#allocation6 + $0x60] sm:$0xff]
        %v425 = vld [vmem:[#allocation6 + $0x68] sm:$0xff]
        %v426 = vld [vmem:[#allocation6 + $0x70] sm:$0xff]
        %v427 = vld [vmem:[#allocation6 + $0x78] sm:$0xff]
        %v428 = vpack.c.bf16 %v413, %v412
        %v429 = vpack.c.bf16 %v415, %v414
        %v430 = vpack.c.bf16 %v417, %v416
        %v431 = vpack.c.bf16 %v419, %v418
        %v432 = vpack.c.bf16 %v421, %v420
        %v433 = vpack.c.bf16 %v423, %v422
        %v434 = vpack.c.bf16 %v425, %v424
        %v435 = vpack.c.bf16 %v427, %v426
        %v436 = vld [vmem:[%s3] sm:$0x1]
        %v438 = vlaneseq
        %v439 = vshrl.u32 %v438, 7
        %v440 = vsub.s32 0, %v439
        %v441 = vrot.slane %v436, %v440
        %443 = vmatprep.subr.bf16.mxu0 0
        %444 = vmatpush1.bf16.msra.mxu0 %v428
        %445 = vmatprep.subr.bf16.mxu0 0
        %446 = vmatpush1.bf16.msra.mxu0 %v429
        %447 = vmatprep.subr.bf16.mxu0 0
        %448 = vmatpush1.bf16.msra.mxu0 %v430
        %449 = vmatprep.subr.bf16.mxu0 0
        %450 = vmatpush1.bf16.msra.mxu0 %v431
        %451 = vmatprep.subr.bf16.mxu0 0
        %452 = vmatpush1.bf16.msra.mxu0 %v432
        %453 = vmatprep.subr.bf16.mxu0 0
        %454 = vmatpush1.bf16.msra.mxu0 %v433
        %455 = vmatprep.subr.bf16.mxu0 0
        %456 = vmatpush1.bf16.msra.mxu0 %v434
        %457 = vmatprep.subr.bf16.mxu0 0
        %458 = vmatpush1.bf16.msra.mxu0 %v435
        %459 = vmatprep.subr.bf16.mxu0 0
        %460 = vmatpush1.bf16.msra.mxu0 0
        %461 = vmatprep.subr.bf16.mxu0 0
        %462 = vmatpush1.bf16.msra.mxu0 0
        %463 = vmatprep.subr.bf16.mxu0 0
        %464 = vmatpush1.bf16.msra.mxu0 0
        %465 = vmatprep.subr.bf16.mxu0 0
        %466 = vmatpush1.bf16.msra.mxu0 0
        %467 = vmatprep.subr.bf16.mxu0 0
        %468 = vmatpush1.bf16.msra.mxu0 0
        %469 = vmatprep.subr.bf16.mxu0 0
        %470 = vmatpush1.bf16.msra.mxu0 0
        %471 = vmatprep.subr.bf16.mxu0 0
        %472 = vmatpush1.bf16.msra.mxu0 0
        %473 = vmatprep.subr.bf16.mxu0 0
        %474 = vmatpush1.bf16.msra.mxu0 0
        %475 = vmatprep.mubr.bf16.mxu0 0
        %476 = vmatmul.mubr.bf16.gmra.mrb[0].mxu0 %v411
        %v477 = vpop.f32.mrb[0].mxu0
        %v478 = vadd.f32 %v441, %v477
        %v479 = vpop.f32.mrb[0].mxu0
        %v480 = vpop.f32.mrb[0].mxu0
        %v481 = vadd.f32 %v441, %v480
        %v482 = vpop.f32.mrb[0].mxu0
        %483 = vdwg.mxu0
        %v484 = vld [vmem:[%s402] sm:$0x1]
        %v485 = vpack.c.bf16 %v484, %v484
        %v486 = vld [vmem:[#allocation8] sm:$0xff]
        %v487 = vld [vmem:[#allocation8 + $0x8] sm:$0xff]
        %v488 = vld [vmem:[#allocation8 + $0x10] sm:$0xff]
        %v489 = vld [vmem:[#allocation8 + $0x18] sm:$0xff]
        %v490 = vld [vmem:[#allocation8 + $0x20] sm:$0xff]
        %v491 = vld [vmem:[#allocation8 + $0x28] sm:$0xff]
        %v492 = vld [vmem:[#allocation8 + $0x30] sm:$0xff]
        %v493 = vld [vmem:[#allocation8 + $0x38] sm:$0xff]
        %v494 = vpack.c.bf16 %v487, %v486
        %v495 = vpack.c.bf16 %v489, %v488
        %v496 = vpack.c.bf16 %v491, %v490
        %v497 = vpack.c.bf16 %v493, %v492
        %v498 = vld [vmem:[%s5] sm:$0x1]
        %vm499 = vcmask 523264
        %v501 = vsel %vm499, %v485, 0
        %503 = vmatprep.subr.bf16.mxu0 0
        %504 = vmatpush1.bf16.msra.mxu0 %v494
        %505 = vmatprep.subr.bf16.mxu0 0
        %506 = vmatpush1.bf16.msra.mxu0 %v495
        %507 = vmatprep.subr.bf16.mxu0 0
        %508 = vmatpush1.bf16.msra.mxu0 %v496
        %509 = vmatprep.subr.bf16.mxu0 0
        %510 = vmatpush1.bf16.msra.mxu0 %v497
        %511 = vmatprep.subr.bf16.mxu0 0
        %512 = vmatpush1.bf16.msra.mxu0 0
        %513 = vmatprep.subr.bf16.mxu0 0
        %514 = vmatpush1.bf16.msra.mxu0 0
        %515 = vmatprep.subr.bf16.mxu0 0
        %516 = vmatpush1.bf16.msra.mxu0 0
        %517 = vmatprep.subr.bf16.mxu0 0
        %518 = vmatpush1.bf16.msra.mxu0 0
        %519 = vmatprep.subr.bf16.mxu0 0
        %520 = vmatpush1.bf16.msra.mxu0 0
        %521 = vmatprep.subr.bf16.mxu0 0
        %522 = vmatpush1.bf16.msra.mxu0 0
        %523 = vmatprep.subr.bf16.mxu0 0
        %524 = vmatpush1.bf16.msra.mxu0 0
        %525 = vmatprep.subr.bf16.mxu0 0
        %526 = vmatpush1.bf16.msra.mxu0 0
        %527 = vmatprep.subr.bf16.mxu0 0
        %528 = vmatpush1.bf16.msra.mxu0 0
        %529 = vmatprep.subr.bf16.mxu0 0
        %530 = vmatpush1.bf16.msra.mxu0 0
        %531 = vmatprep.subr.bf16.mxu0 0
        %532 = vmatpush1.bf16.msra.mxu0 0
        %533 = vmatprep.subr.bf16.mxu0 0
        %534 = vmatpush1.bf16.msra.mxu0 0
        %535 = vmatprep.mubr.bf16.mxu0 0
        %536 = vmatmul.mubr.bf16.gmra.mrb[0].mxu0 %v501
        %v537 = vpop.f32.mrb[0].mxu0
        %v538 = vadd.f32 %v498, %v537
        %v539 = vpop.f32.mrb[0].mxu0
        %v540 = vpop.f32.mrb[0].mxu0
        %v541 = vpop.f32.mrb[0].mxu0
        %542 = vdwg.mxu0
        %v543 = vlaneseq
        %v544 = vshrl.u32 %v543, 7
        %v545 = vsub.s32 0, %v544
        %v546 = vrot.slane %v538, %v545
        %v547 = vadd.f32 %v478, %v546
        %v548 = vadd.f32 %v481, %v546
        %v549 = vmax.f32 %v547, 0.0
        %v550 = vmax.f32 %v548, 0.0
        %v551 = vld [vmem:[%s6] sm:$0x1]
        %v553 = vlaneseq
        %v554 = vshrl.u32 %v553, 7
        %v555 = vsub.s32 0, %v554
        %v556 = vrot.slane %v551, %v555
        %v558 = vmul.f32 %v549, %v556
        %v559 = vmul.f32 %v550, %v556
        %560 = vadd.xlane.f32.xlu0 %v558
        %v561 = vpop.xlane.xlu0 %560
        %562 = vadd.xlane.f32.xlu0 %v559
        %v563 = vpop.xlane.xlu0 %562
        %v564 = vld [vmem:[#allocation2] sm:$0x1]
        %v566 = vlaneseq
        %v567 = vshrl.u32 %v566, 7
        %v568 = vsub.s32 0, %v567
        %v569 = vrot.slane %v564, %v568
        %v571 = vadd.f32 %v561, %v569
        %v572 = vadd.f32 %v563, %v569
        %vm573 = vcmask 7168
        %v574 = vsel %vm573, %v571, -inf
        %v575 = vsel %vm573, %v572, -inf
        %v576 = vmax.f32 %v574, %v575
        %v577 = vrot.slane %v576, 4
        %v578 = vmax.f32 %v576, %v577
        %v579 = vrot.slane %v578, 2
        %v580 = vmax.f32 %v578, %v579
        %v581 = vrot.slane %v580, 1
        %v582 = vmax.f32 %v580, %v581
        %v583 = vsub.f32 %v571, %v582
        %v584 = vsub.f32 %v572, %v582
        %v585 = vmul.f32 %v583, 1.442695
        %v586 = vpow.pop %v585
        %v587 = vmul.f32 %v584, 1.442695
        %v588 = vpow.pop %v587
        %v589 = vsel %vm573, %v586, 0.0
        %v590 = vsel %vm573, %v588, 0.0
        %v591 = vadd.f32 %v589, %v590
        %v592 = vrot.slane %v591, 4
        %v593 = vadd.f32 %v591, %v592
        %v594 = vrot.slane %v593, 2
        %v595 = vadd.f32 %v593, %v594
        %v596 = vrot.slane %v595, 1
        %v597 = vadd.f32 %v595, %v596
        %v598 = vrcp.pop %v597
        %v599 = vmul.f32 %v586, %v598
        %v600 = vmul.f32 %v588, %v598
        %601 = vst.msk [vmem:[%s407] sm:$0xff] %vm573, %v599
        %602 = vst.msk [vmem:[%s407 + $0x8] sm:$0xff] %vm573, %v600
        %604 = vset.pattern.permute.xlu0 0
        %605 = vperm.xlu0 %604, %v599
        %v606 = vpop.permute.xlu0 %605
        %609 = vset.pattern.permute.xlu0 0
        %610 = vperm.xlu0 %609, %v600
        %v611 = vpop.permute.xlu0 %610
        %v613 = vmul.f32 %v409, %v606
        %v614 = vmul.f32 %v410, %v611
        %v615 = vadd.f32 %v613, %v614
        %v616 = vrot.slane %v615, 4
        %v617 = vadd.f32 %v615, %v616
        %v618 = vrot.slane %v617, 2
        %v619 = vadd.f32 %v617, %v618
        %v620 = vrot.slane %v619, 1
        %v621 = vadd.f32 %v619, %v620
        %622 = vst [vmem:[%s392] sm:$0x1] %v621
        %s623 = sand.u32 %s216, 1
        %s624 = scalar_lea.sflag [#allocation5], %s623
        %s625 = sand.u32 %s216, 1
        %s626 = scalar_lea.vmem [#allocation9], %s625
        %p627 = scmp.lt.s32.totalorder %s30, 1
        %s628 = scalar_select %p627, %s30, 1
        %s629 = smul.addr %s628, 2
        %s630 = smul.addr %s629, 8
        %s631 = scalar_lea.vmem %s9, %s630
        // Predicated region
        $region65: #{attention_forward.1} parent=51 // pred_check
          %p632 = pneg %p226
        $region66: #{attention_forward.1} parent=51 // pred_check_branch
          %634 = sbr.rel (%p632) target = $region68
        $region67: #{attention_forward.1} parent=51 // pred_region
          %s636 = ssub.s32 16, 16
          %637 = vsyncadd %s624, %s636
          %s638 = smul.addr %s30, 16
          %s639 = scalar_lea.hbm %s8, %s638
          %s641 = sshll.u32 %s626, 4
          %s642 = int_to_ptr.vmem [resolvable:$true] %s641
          %644 = dma.vmem_to_hbm [thread:$0]  %s642, 16, %s639, %s624
        $region68: #{attention_forward.1} parent=51 // pred_fallthru
          _
        // Predicated region
        $region69: #{attention_forward.1} parent=51 // pred_check
          %p645 = pneg %p252
        $region70: #{attention_forward.1} parent=51 // pred_check_branch
          %647 = sbr.rel (%p645) target = $region72
        $region71: #{attention_forward.1} parent=51 // pred_region
          _
        $region72: #{attention_forward.1} parent=51 // pred_fallthru
          _
      $region52: #{attention_forward.1} parent=5 // pred_fallthru
        _
      %p648 = scmp.le.s32.totalorder 2, %s25
      // Predicated region
      $region73: #{attention_forward.1} parent=5 // pred_check
        %p649 = pneg %p648
      $region74: #{attention_forward.1} parent=5 // pred_check_branch
        %651 = sbr.rel (%p649) target = $region76
      $region75: #{attention_forward.1} parent=5 // pred_region
        %s652 = ssub.s32 %s25, 2
        // Predicated region
        $region77: #{attention_forward.1} parent=75 // pred_check
          %p653 = pneg %p232
        $region78: #{attention_forward.1} parent=75 // pred_check_branch
          %655 = sbr.rel (%p653) target = $region80
        $region79: #{attention_forward.1} parent=75 // pred_region
          %s656 = sand.u32 %s217, 1
          %s657 = scalar_lea.sflag [#allocation5], %s656
          %s658 = sand.u32 %s217, 1
          %s659 = scalar_lea.vmem [#allocation9], %s658
          %660 = dma.done %s657, 16
        $region80: #{attention_forward.1} parent=75 // pred_fallthru
          _
        // Predicated region
        $region81: #{attention_forward.1} parent=75 // pred_check
          %p661 = pneg %p258
        $region82: #{attention_forward.1} parent=75 // pred_check_branch
          %663 = sbr.rel (%p661) target = $region84
        $region83: #{attention_forward.1} parent=75 // pred_region
          %p664 = scmp.lt.s32.totalorder %s31, 1
          %s665 = scalar_select %p664, %s31, 1
          %s666 = smul.addr %s665, 2
          %s667 = smul.addr %s666, 8
          %s668 = scalar_lea.vmem %s9, %s667
        $region84: #{attention_forward.1} parent=75 // pred_fallthru
          _
      $region76: #{attention_forward.1} parent=5 // pred_fallthru
        _
    $region6: #{attention_forward.1} parent=1 // loop_footer
      %s29 = sadd.s32 1, %s25
    $region7: #{attention_forward.1} parent=1 // loop_footer_branch
      %24 = sbr.rel target = $region3
    $region8: #{attention_forward.1} parent=1 // loop_exit
      _
    %669 = vsyncpa [#allocation4], 1
    %s670 = scalar_lea.sflag [#allocation4], 1
    %671 = vsyncpa %s670, 1
    %672 = vsyncpa [#allocation7], 1
    %673 = vsyncpa [#allocation5], 1
    %s674 = scalar_lea.sflag [#allocation5], 1
    %675 = vsyncpa %s674, 1

</llo_original>
